<compile_context>
chip_gen: v5e
topology: v5e:2x2
jax: 0.10.0
libtpu: 0.0.40
codegen_flags: <defaults>
</compile_context>

<pallas_src>
import jax
import jax.numpy as jnp
from jax.experimental import pallas as pl
from jax.experimental.pallas import tpu as pltpu


def policy_net_kernel(x_ref, w1_ref, w2_ref, o_ref):
    D = x_ref.shape[1]          # w1_ref is (D+1, H): rows [0:D] weights, row D = b1
    H = w2_ref.shape[0] - 1     # w2_ref is (H+1, A_pad): rows [0:H] weights, row H = b2

    # Hidden layer: matmul on MXU, bias add + ReLU on VPU.
    h = jnp.dot(x_ref[...], w1_ref[:D, :], preferred_element_type=jnp.float32)
    h = jnp.maximum(h + w1_ref[D:D + 1, :], 0.0)

    # Output layer over the lane-dense (128-wide) padded asset axis.
    logits = jnp.dot(h, w2_ref[:H, :], preferred_element_type=jnp.float32)
    logits = logits + w2_ref[H:H + 1, :]

    # Numerically-stable softmax; padded lanes carry -1e30 bias -> exp() == 0,
    # so they do not perturb the max or the sum.
    m = jnp.max(logits, axis=-1, keepdims=True)
    e = jnp.exp(logits - m)
    denom = jnp.sum(e, axis=-1, keepdims=True)
    inv = pl.reciprocal(denom, approx=False)  # exact: keeps 1e-5 tolerances
    o_ref[...] = (e * inv).astype(o_ref.dtype)


def make_policy_net_forward(w1, b1, w2, b2, *, lane_pad=128):
    """One-time weight packing; returns (forward, forward_padded) closures."""
    D, H = w1.shape
    A = w2.shape[1]
    A_pad = lane_pad * pl.cdiv(A, lane_pad)

    # --- one-time packing (hoisted out of the per-call path) ---------------
    # Fold b1 as the last row of the first-layer slab.
    w1_slab = jnp.concatenate([w1, b1.reshape(1, H)], axis=0)               # (D+1, H)
    # Lane-dense output: pad asset axis to 128. Zero weight columns and a
    # large-finite-negative bias make padded logits exp to exactly 0.
    w2_pad = jnp.pad(w2, ((0, 0), (0, A_pad - A)))                          # (H, A_pad)
    b2_pad = jnp.concatenate(
        [b2, jnp.full((A_pad - A,), -1e30, b2.dtype)]).reshape(1, A_pad)
    w2_slab = jnp.concatenate([w2_pad, b2_pad], axis=0)                     # (H+1, A_pad)
    w1_slab, w2_slab = jax.block_until_ready((w1_slab, w2_slab))

    vmem = pl.BlockSpec(memory_space=pltpu.MemorySpace.VMEM)

    def _padded_forward(x):
        B = x.shape[0]
        cost = pl.CostEstimate(
            flops=2 * B * D * H + 2 * B * H * A_pad,
            transcendentals=B * (A_pad + 1),                 # exp + reciprocal
            bytes_accessed=4 * (B * D + (D + 1) * H + (H + 1) * A_pad + B * A_pad),
        )
        # Tiny, overhead-bound problem: single block, everything resident in VMEM.
        return pl.pallas_call(
            policy_net_kernel,
            out_shape=jax.ShapeDtypeStruct((B, A_pad), jnp.float32),
            in_specs=[vmem, vmem, vmem],
            out_specs=vmem,
            cost_estimate=cost,
        )(x, w1_slab, w2_slab)

    # Padded variant: downstream ops (argmax / sampling / loss) can consume the
    # (B, 128) slab directly — padded lanes are exactly 0 — skipping the slice.
    forward_padded = jax.jit(_padded_forward)

    @jax.jit
    def forward(x):
        # Spec-matching (B, n_assets) output; slice fuses inside this jit.
        return _padded_forward(x)[:, :A]

    return forward, forward_padded


def _reference_forward(x, w1, b1, w2, b2):
    h = jnp.maximum(x @ w1 + b1, 0.0)
    logits = h @ w2 + b2
    return jax.nn.softmax(logits, axis=-1)


if __name__ == "__main__":
    # Small shapes consistent with PolicyNet(input_dim, n_assets)
    batch = 8
    input_dim = 4
    hidden = 128
    n_assets = 8

    key = jax.random.PRNGKey(0)
    kx, kw1, kb1, kw2, kb2 = jax.random.split(key, 5)

    x = jax.random.normal(kx, (batch, input_dim), dtype=jnp.float32)

    # Deterministic parameter init (uniform, PyTorch-Linear-style bounds).
    bound1 = 1.0 / jnp.sqrt(input_dim)
    w1 = jax.random.uniform(kw1, (input_dim, hidden), jnp.float32, -bound1, bound1)
    b1 = jax.random.uniform(kb1, (hidden,), jnp.float32, -bound1, bound1)
    bound2 = 1.0 / jnp.sqrt(hidden)
    w2 = jax.random.uniform(kw2, (hidden, n_assets), jnp.float32, -bound2, bound2)
    b2 = jax.random.uniform(kb2, (n_assets,), jnp.float32, -bound2, bound2)

    # One-time packing + jitted closures.
    forward, forward_padded = make_policy_net_forward(w1, b1, w2, b2)

    out = jax.block_until_ready(forward(x))
    out_pad = jax.block_until_ready(forward_padded(x))

    ref = _reference_forward(x, w1, b1, w2, b2)
    assert out.shape == (batch, n_assets)
    assert jnp.allclose(out, ref, atol=1e-5, rtol=1e-5)
    assert jnp.allclose(jnp.sum(out, axis=-1), 1.0, atol=1e-5)
    # Padded slab: real lanes match, padded lanes are exactly zero.
    assert out_pad.shape == (batch, 128)
    assert jnp.allclose(out_pad[:, :n_assets], ref, atol=1e-5, rtol=1e-5)
    assert jnp.all(out_pad[:, n_assets:] == 0.0)

    print("KERNEL_OK")
</pallas_src>

<mosaic_0001>
module attributes {stable_mosaic.version = 11 : i64} {
  func.func @policy_net_kernel(%arg0: memref<8x4xf32, #tpu.memory_space<vmem>>, %arg1: memref<5x128xf32, #tpu.memory_space<vmem>>, %arg2: memref<129x128xf32, #tpu.memory_space<vmem>>, %arg3: memref<8x128xf32, #tpu.memory_space<vmem>>) attributes {dimension_semantics = [], scalar_prefetch = 0 : i64, scratch_operands = 0 : i64, tpu.core_type = #tpu.core_type<tc>} {
    %c0 = arith.constant 0 : index
    %c0_0 = arith.constant 0 : index
    %0 = vector.load %arg0[%c0, %c0_0] : memref<8x4xf32, #tpu.memory_space<vmem>>, vector<8x4xf32>
    %c0_1 = arith.constant 0 : index
    %c0_2 = arith.constant 0 : index
    %1 = vector.load %arg1[%c0_1, %c0_2] : memref<5x128xf32, #tpu.memory_space<vmem>>, vector<4x128xf32>
    %cst = arith.constant dense<0.000000e+00> : vector<8x128xf32>
    %2 = tpu.matmul %0, %1, %cst {dimension_numbers = #tpu.dot_dimension_numbers<[1], [0], [0], [1], [0, 0, 1, 1], [], []>} : vector<8x4xf32>, vector<4x128xf32>, vector<8x128xf32> -> vector<8x128xf32>
    %c4 = arith.constant 4 : index
    %c0_3 = arith.constant 0 : index
    %3 = vector.load %arg1[%c4, %c0_3] : memref<5x128xf32, #tpu.memory_space<vmem>>, vector<1x128xf32>
    %4 = vector.broadcast %3 : vector<1x128xf32> to vector<8x128xf32>
    %5 = arith.addf %2, %4 : vector<8x128xf32>
    %cst_4 = arith.constant 0.000000e+00 : f32
    %6 = vector.broadcast %cst_4 : f32 to vector<8x128xf32>
    %7 = arith.maximumf %5, %6 : vector<8x128xf32>
    %c0_5 = arith.constant 0 : index
    %c0_6 = arith.constant 0 : index
    %8 = vector.load %arg2[%c0_5, %c0_6] : memref<129x128xf32, #tpu.memory_space<vmem>>, vector<128x128xf32>
    %cst_7 = arith.constant dense<0.000000e+00> : vector<8x128xf32>
    %9 = tpu.matmul %7, %8, %cst_7 {dimension_numbers = #tpu.dot_dimension_numbers<[1], [0], [0], [1], [0, 0, 1, 1], [], []>} : vector<8x128xf32>, vector<128x128xf32>, vector<8x128xf32> -> vector<8x128xf32>
    %c128 = arith.constant 128 : index
    %c0_8 = arith.constant 0 : index
    %10 = vector.load %arg2[%c128, %c0_8] : memref<129x128xf32, #tpu.memory_space<vmem>>, vector<1x128xf32>
    %11 = vector.broadcast %10 : vector<1x128xf32> to vector<8x128xf32>
    %12 = arith.addf %9, %11 : vector<8x128xf32>
    %cst_9 = arith.constant dense<0xFF800000> : vector<8xf32>
    %13 = vector.multi_reduction <maximumf>, %12, %cst_9 [1] : vector<8x128xf32> to vector<8xf32>
    %14 = vector.shape_cast %13 : vector<8xf32> to vector<8x1xf32>
    %15 = vector.broadcast %14 : vector<8x1xf32> to vector<8x128xf32>
    %16 = arith.subf %12, %15 : vector<8x128xf32>
    %17 = math.exp %16 : vector<8x128xf32>
    %cst_10 = arith.constant dense<0.000000e+00> : vector<8xf32>
    %18 = vector.multi_reduction <add>, %17, %cst_10 [1] : vector<8x128xf32> to vector<8xf32>
    %19 = vector.shape_cast %18 : vector<8xf32> to vector<8x1xf32>
    %20 = tpu.reciprocal %19 : vector<8x1xf32> -> vector<8x1xf32>
    %21 = vector.broadcast %20 : vector<8x1xf32> to vector<8x128xf32>
    %22 = arith.mulf %17, %21 : vector<8x128xf32>
    %c0_11 = arith.constant 0 : index
    %c0_12 = arith.constant 0 : index
    %23 = vector.load %arg3[%c0_11, %c0_12] : memref<8x128xf32, #tpu.memory_space<vmem>>, vector<8x128xf32>
    tpu.vector_store %arg3[%c0_11, %c0_12], %22 {strides = array<i32>} : memref<8x128xf32, #tpu.memory_space<vmem>>, vector<8x128xf32>,
    return
  }
}

</mosaic_0001>

<llo_original>
// kernel: forward.1
$region0: #{forward.1}
  #allocation0 [shape = 'u32[]', space=smem, size = 0x4, offset = 0x4, fixed_abs, tag = 'smem constant byte address 0x4 - core index']
  #allocation1 [shape = 'u32[72,128]{1,0:T(1,128)}', space=vmem, size = 0x9000, scoped, tag = 'internal scratch']
  %s0 = inlined_call_operand.vmem [shape: f32[8,4], index: 0, kind: input, shape index: {}]
  %s1 = inlined_call_operand.vmem [shape: f32[5,128], index: 1, kind: input, shape index: {}]
  %s2 = inlined_call_operand.hbm [shape: f32[129,128], index: 2, kind: input, shape index: {}]
  %s3 = inlined_call_operand.hbm [shape: f32[8,128], index: 3, kind: output, shape index: {}]
  %s4 = sld [smem:[#allocation0]]
  $region26: #{forward.1} parent=0
    _
  %s6 = ssub.s32 1, %s4
  %s7 = scalar_select 0, %s6, %s4
  $region1: #{forward.1} parent=0
    #allocation2 [shape = 'u8[69632]{0}', space=vmem, size = 0x11000, scoped, tag = 'input window, operand 2, single buffered']
    #allocation3 [shape = 's32[1]{0}', space=sflag, size = 0x4, scoped, tag = 'scoped memory for forward.1']
    #allocation4 [shape = 's32[1]{0}', space=sflag, size = 0x4, scoped, tag = 'scoped memory for forward.1']
    #allocation5 [shape = 'u8[4096]{0}', space=vmem, size = 0x1000, scoped, tag = 'output window, operand 0, single buffered']
    %8 = vsyncpa [#allocation3], 0
    %9 = vsyncpa [#allocation4], 0
    // Predicated region
    $region2: #{forward.1} parent=1 // pred_check
      _
    $region3: #{forward.1} parent=1 // pred_check_branch
      %11 = sbr.rel (0) target = $region5
    $region4: #{forward.1} parent=1 // pred_region
      _
    $region5: #{forward.1} parent=1 // pred_fallthru
      _
    // Predicated region
    $region6: #{forward.1} parent=1 // pred_check
      _
    $region7: #{forward.1} parent=1 // pred_check_branch
      %13 = sbr.rel (0) target = $region9
    $region8: #{forward.1} parent=1 // pred_region
      _
    $region9: #{forward.1} parent=1 // pred_fallthru
      _
    // Predicated region
    $region10: #{forward.1} parent=1 // pred_check
      _
    $region11: #{forward.1} parent=1 // pred_check_branch
      %15 = sbr.rel (0) target = $region13
    $region12: #{forward.1} parent=1 // pred_region
      %17 = vsyncadd [#allocation3], 0
      %s18 = sshll.u32 %s2, 4
      %s19 = int_to_ptr.hbm [resolvable:$true] %s18
      %s20 = sshll.u32 [#allocation2], 4
      %s21 = int_to_ptr.vmem [resolvable:$true] %s20
      %26 = dma.hbm_to_vmem [thread:$0]  %s19, 2176, %s21, [#allocation3], 128, 128, 8
    $region13: #{forward.1} parent=1 // pred_fallthru
      _
    // Predicated region
    $region14: #{forward.1} parent=1 // pred_check
      _
    $region15: #{forward.1} parent=1 // pred_check_branch
      %28 = sbr.rel (0) target = $region17
    $region16: #{forward.1} parent=1 // pred_region
      %30 = dma.done [#allocation3], 2176
    $region17: #{forward.1} parent=1 // pred_fallthru
      _
    %v31 = vld [vmem:[%s0] sm:$0xff]
    %v32 = vld [vmem:[%s1] sm:$0xf]
    %v33 = vld [vmem:[%s1 + $0x4] sm:$0x1]
    %v34 = vperm.slane %v33, 0
    %vm35 = vcmask 31744
    %v37 = vsel %vm35, %v31, 0
    %vm39 = vcmask 1043456
    %v41 = vsel %vm39, %v32, 0
    %43 = vmatpush.msra.mxu0 0.0
    %44 = vmatpush.msra.mxu0 0.0
    %45 = vmatpush.msra.mxu0 0.0
    %46 = vmatpush.msra.mxu0 0.0
    %47 = vmatpush.msra.mxu0 0.0
    %48 = vmatpush.msra.mxu0 0.0
    %49 = vmatpush.msra.mxu0 0.0
    %50 = vmatpush.msra.mxu0 0.0
    %51 = vmatpush.msra.mxu0 0.0
    %52 = vmatpush.msra.mxu0 0.0
    %53 = vmatpush.msra.mxu0 0.0
    %54 = vmatpush.msra.mxu0 0.0
    %55 = vmatpush.msra.mxu0 0.0
    %56 = vmatpush.msra.mxu0 0.0
    %57 = vmatpush.msra.mxu0 0.0
    %58 = vmatpush.msra.mxu0 %v41
    %59 = vmatmul.f32.gmra.mxu0 %v37
    %v60 = vpop.f32.mrf.mxu0
    %v61 = vadd.f32 %v34, %v60
    %62 = vdwg.mxu0
    %v63 = vmax.f32 %v61, 0.0
    %v64 = vld [vmem:[#allocation2] sm:$0xff]
    %v65 = vld [vmem:[#allocation2 + $0x8] sm:$0xff]
    %v66 = vld [vmem:[#allocation2 + $0x10] sm:$0xff]
    %v67 = vld [vmem:[#allocation2 + $0x18] sm:$0xff]
    %v68 = vld [vmem:[#allocation2 + $0x20] sm:$0xff]
    %v69 = vld [vmem:[#allocation2 + $0x28] sm:$0xff]
    %v70 = vld [vmem:[#allocation2 + $0x30] sm:$0xff]
    %v71 = vld [vmem:[#allocation2 + $0x38] sm:$0xff]
    %v72 = vld [vmem:[#allocation2 + $0x40] sm:$0xff]
    %v73 = vld [vmem:[#allocation2 + $0x48] sm:$0xff]
    %v74 = vld [vmem:[#allocation2 + $0x50] sm:$0xff]
    %v75 = vld [vmem:[#allocation2 + $0x58] sm:$0xff]
    %v76 = vld [vmem:[#allocation2 + $0x60] sm:$0xff]
    %v77 = vld [vmem:[#allocation2 + $0x68] sm:$0xff]
    %v78 = vld [vmem:[#allocation2 + $0x70] sm:$0xff]
    %v79 = vld [vmem:[#allocation2 + $0x78] sm:$0xff]
    %v80 = vld [vmem:[#allocation2 + $0x80] sm:$0x1]
    %v81 = vperm.slane %v80, 0
    %82 = vmatpush.msra.mxu0 %v79
    %83 = vmatpush.msra.mxu0 %v78
    %84 = vmatpush.msra.mxu0 %v77
    %85 = vmatpush.msra.mxu0 %v76
    %86 = vmatpush.msra.mxu0 %v75
    %87 = vmatpush.msra.mxu0 %v74
    %88 = vmatpush.msra.mxu0 %v73
    %89 = vmatpush.msra.mxu0 %v72
    %90 = vmatpush.msra.mxu0 %v71
    %91 = vmatpush.msra.mxu0 %v70
    %92 = vmatpush.msra.mxu0 %v69
    %93 = vmatpush.msra.mxu0 %v68
    %94 = vmatpush.msra.mxu0 %v67
    %95 = vmatpush.msra.mxu0 %v66
    %96 = vmatpush.msra.mxu0 %v65
    %97 = vmatpush.msra.mxu0 %v64
    %98 = vmatmul.f32.gmra.mxu0 %v63
    %v99 = vpop.f32.mrf.mxu0
    %v100 = vadd.f32 %v81, %v99
    %101 = vdwg.mxu0
    %102 = vmax.xlane.f32.xlu0 %v100
    %v103 = vpop.xlane.xlu0 %102
    %v104 = vsub.f32 %v100, %v103
    %v105 = vmul.f32 %v104, 1.442695
    %v106 = vpow.pop %v105
    %107 = vadd.xlane.f32.xlu0 %v106
    %v108 = vpop.xlane.xlu0 %107
    %v109 = vrcp.pop %v108
    %v110 = vmul.f32 %v108, %v109
    %v111 = vsub.f32 1.0, %v110
    %v112 = vmul.f32 %v109, %v111
    %v113 = vadd.f32 %v109, %v112
    %vm114 = vweird.f32 %v108
    %vm115 = vweird.f32 %v109
    %vm116 = vmor %vm114, %vm115
    %v117 = vsel %vm116, %v109, %v113
    %v118 = vand.u32 2147483647, %v108
    %vm119 = vcmp.eq.f32.partialorder %v118, 8.507059e+37
    %v120 = vand.u32 %v108, 2147483648
    %v121 = vor.u32 1.1754944e-38, %v120
    %v122 = vsel %vm119, %v121, %v117
    %v123 = vmul.f32 %v106, %v122
    %124 = vst [vmem:[#allocation5] sm:$0xff] %v123
    // Predicated region
    $region18: #{forward.1} parent=1 // pred_check
      _
    $region19: #{forward.1} parent=1 // pred_check_branch
      %126 = sbr.rel (0) target = $region21
    $region20: #{forward.1} parent=1 // pred_region
      %128 = vsyncadd [#allocation4], 0
      %s130 = sshll.u32 [#allocation5], 4
      %s131 = int_to_ptr.vmem [resolvable:$true] %s130
      %s132 = sshll.u32 %s3, 4
      %s133 = int_to_ptr.hbm [resolvable:$true] %s132
      %135 = dma.vmem_to_hbm [thread:$0]  %s131, 128, %s133, [#allocation4]
    $region21: #{forward.1} parent=1 // pred_fallthru
      _
    // Predicated region
    $region22: #{forward.1} parent=1 // pred_check
      _
    $region23: #{forward.1} parent=1 // pred_check_branch
      %137 = sbr.rel (0) target = $region25
    $region24: #{forward.1} parent=1 // pred_region
      %139 = dma.done [#allocation4], 128
    $region25: #{forward.1} parent=1 // pred_fallthru
      _
    %140 = vsyncpa [#allocation3], 1
    %141 = vsyncpa [#allocation4], 1

</llo_original>
